<compile_context>
chip_gen: v7x
topology: tpu7x:2x2x1
jax: 0.10.0
libtpu: 0.0.40
codegen_flags: <defaults>
</compile_context>

<pallas_src>
import jax
import jax.numpy as jnp
from jax.experimental import pallas as pl
from jax.experimental.pallas import tpu as pltpu

_BN_EPS = 1e-5  # PyTorch BatchNorm1d default


# ---------------------------------------------------------------------------
# Kernels
# ---------------------------------------------------------------------------
def _linear_bn_relu_kernel(x_ref, w_ref, b_ref, g_ref, beta_ref, o_ref):
    # x: (B, K)  w: (K, tn)  b/g/beta: (1, tn)  o: (B, tn)
    x = x_ref[...]
    w = w_ref[...]
    h = jnp.dot(x, w, preferred_element_type=jnp.float32) + b_ref[...]
    # BatchNorm1d training-mode forward: per-feature batch mean / biased var.
    mean = jnp.mean(h, axis=0, keepdims=True)
    var = jnp.mean(jnp.square(h - mean), axis=0, keepdims=True)
    inv = jax.lax.rsqrt(var + _BN_EPS)
    y = (h - mean) * inv * g_ref[...] + beta_ref[...]
    o_ref[...] = jnp.maximum(y, 0.0).astype(o_ref.dtype)


def _linear_kernel(x_ref, w_ref, b_ref, o_ref):
    x = x_ref[...]
    w = w_ref[...]
    h = jnp.dot(x, w, preferred_element_type=jnp.float32) + b_ref[...]
    o_ref[...] = h.astype(o_ref.dtype)


# ---------------------------------------------------------------------------
# Wrappers
# ---------------------------------------------------------------------------
def _pick_feature_tile(n, max_tile=2048):
    """Largest power-of-two multiple of 128 that divides n (capped), else n.

    Full-dim blocks are always legal on TPU, so small / odd feature dims use a
    single block; large 128-divisible dims get big lane-dense tiles.
    """
    if n % 128 != 0:
        return n
    t = 128
    while (t * 2) <= max_tile and n % (t * 2) == 0:
        t *= 2
    return t


def linear_bn_relu(x, w, b, gamma, beta):
    B, K = x.shape
    _, N = w.shape
    tn = _pick_feature_tile(N)
    b2 = b.reshape(1, N)
    g2 = gamma.reshape(1, N)
    bt2 = beta.reshape(1, N)
    return pl.pallas_call(
        _linear_bn_relu_kernel,
        out_shape=jax.ShapeDtypeStruct((B, N), x.dtype),
        grid_spec=pltpu.PrefetchScalarGridSpec(
            num_scalar_prefetch=0,
            grid=(N // tn,),
            in_specs=[
                pl.BlockSpec((B, K), lambda j: (0, 0)),   # full batch, resident
                pl.BlockSpec((K, tn), lambda j: (0, j)),
                pl.BlockSpec((1, tn), lambda j: (0, j)),
                pl.BlockSpec((1, tn), lambda j: (0, j)),
                pl.BlockSpec((1, tn), lambda j: (0, j)),
            ],
            out_specs=pl.BlockSpec((B, tn), lambda j: (0, j)),
        ),
        compiler_params=pltpu.CompilerParams(
            dimension_semantics=("parallel",)
        ),
    )(x, w, b2, g2, bt2)


def linear(x, w, b):
    B, K = x.shape
    _, N = w.shape
    tn = _pick_feature_tile(N)
    b2 = b.reshape(1, N)
    return pl.pallas_call(
        _linear_kernel,
        out_shape=jax.ShapeDtypeStruct((B, N), x.dtype),
        grid_spec=pltpu.PrefetchScalarGridSpec(
            num_scalar_prefetch=0,
            grid=(N // tn,),
            in_specs=[
                pl.BlockSpec((B, K), lambda j: (0, 0)),
                pl.BlockSpec((K, tn), lambda j: (0, j)),
                pl.BlockSpec((1, tn), lambda j: (0, j)),
            ],
            out_specs=pl.BlockSpec((B, tn), lambda j: (0, j)),
        ),
        compiler_params=pltpu.CompilerParams(
            dimension_semantics=("parallel",)
        ),
    )(x, w, b2)


def ae_forward(x, params):
    """Matches AE.forward: returns (x_bar, enc_h1, enc_h2, enc_h3, z, dec_h3)."""
    enc_h1 = linear_bn_relu(x, *params["enc1"])
    enc_h2 = linear_bn_relu(enc_h1, *params["enc2"])
    enc_h3 = linear_bn_relu(enc_h2, *params["enc3"])
    z = linear(enc_h3, *params["z"])
    dec_h1 = linear_bn_relu(z, *params["dec1"])
    dec_h2 = linear_bn_relu(dec_h1, *params["dec2"])
    dec_h3 = linear_bn_relu(dec_h2, *params["dec3"])
    x_bar = linear(dec_h3, *params["xbar"])
    return x_bar, enc_h1, enc_h2, enc_h3, z, dec_h3


# ---------------------------------------------------------------------------
# Pure-JAX reference (for correctness check)
# ---------------------------------------------------------------------------
def _ref_linear(x, w, b):
    return jnp.dot(x, w, preferred_element_type=jnp.float32) + b


def _ref_linear_bn_relu(x, w, b, g, beta):
    h = _ref_linear(x, w, b)
    m = jnp.mean(h, axis=0, keepdims=True)
    v = jnp.mean(jnp.square(h - m), axis=0, keepdims=True)
    y = (h - m) * jax.lax.rsqrt(v + _BN_EPS) * g + beta
    return jnp.maximum(y, 0.0)


def ae_forward_ref(x, params):
    enc_h1 = _ref_linear_bn_relu(x, *params["enc1"])
    enc_h2 = _ref_linear_bn_relu(enc_h1, *params["enc2"])
    enc_h3 = _ref_linear_bn_relu(enc_h2, *params["enc3"])
    z = _ref_linear(enc_h3, *params["z"])
    dec_h1 = _ref_linear_bn_relu(z, *params["dec1"])
    dec_h2 = _ref_linear_bn_relu(dec_h1, *params["dec2"])
    dec_h3 = _ref_linear_bn_relu(dec_h2, *params["dec3"])
    x_bar = _ref_linear(dec_h3, *params["xbar"])
    return x_bar, enc_h1, enc_h2, enc_h3, z, dec_h3


# ---------------------------------------------------------------------------
# Demo / self-check
# ---------------------------------------------------------------------------
if __name__ == "__main__":
    key = jax.random.PRNGKey(0)

    batch = 8
    n_input, n_enc_1, n_enc_2, n_enc_3 = 32, 64, 32, 16
    n_z = 8
    n_dec_1, n_dec_2, n_dec_3 = 16, 32, 64

    layer_dims = {
        "enc1": (n_input, n_enc_1, True),
        "enc2": (n_enc_1, n_enc_2, True),
        "enc3": (n_enc_2, n_enc_3, True),
        "z":    (n_enc_3, n_z,     False),
        "dec1": (n_z,     n_dec_1, True),
        "dec2": (n_dec_1, n_dec_2, True),
        "dec3": (n_dec_2, n_dec_3, True),
        "xbar": (n_dec_3, n_input, False),
    }

    params = {}
    for name, (din, dout, has_bn) in layer_dims.items():
        key, kw, kb, kg, kbt = jax.random.split(key, 5)
        w = jax.random.normal(kw, (din, dout), jnp.float32) / jnp.sqrt(din)
        b = 0.1 * jax.random.normal(kb, (dout,), jnp.float32)
        if has_bn:
            g = 1.0 + 0.1 * jax.random.normal(kg, (dout,), jnp.float32)
            bt = 0.1 * jax.random.normal(kbt, (dout,), jnp.float32)
            params[name] = (w, b, g, bt)
        else:
            params[name] = (w, b)

    key, kx = jax.random.split(key)
    x = jax.random.normal(kx, (batch, n_input), jnp.float32)

    outs = ae_forward(x, params)
    outs = jax.block_until_ready(outs)

    refs = ae_forward_ref(x, params)
    names = ["x_bar", "enc_h1", "enc_h2", "enc_h3", "z", "dec_h3"]
    for nm, o, r in zip(names, outs, refs):
        assert o.shape == r.shape, f"shape mismatch in {nm}"
        assert jnp.allclose(o, r, rtol=2e-3, atol=2e-3), f"value mismatch in {nm}"

    print("KERNEL_OK")
</pallas_src>

<mosaic_0001>
module attributes {stable_mosaic.version = 11 : i64} {
  func.func @_linear_bn_relu_kernel(%arg0: i32, %arg1: memref<8x32xf32, #tpu.memory_space<vmem>>, %arg2: memref<32x64xf32, #tpu.memory_space<vmem>>, %arg3: memref<1x64xf32, #tpu.memory_space<vmem>>, %arg4: memref<1x64xf32, #tpu.memory_space<vmem>>, %arg5: memref<1x64xf32, #tpu.memory_space<vmem>>, %arg6: memref<8x64xf32, #tpu.memory_space<vmem>>) attributes {dimension_semantics = [#tpu.dimension_semantics<parallel>], iteration_bounds = array<i64: 1>, scalar_prefetch = 0 : i64, scratch_operands = 0 : i64, tpu.core_type = #tpu.core_type<tc>, window_params = [{pipeline_mode = #tpu.pipeline_mode<synchronous>, transform_indices = @transform_0, window_bounds = array<i64: 8, 32>}, {transform_indices = @transform_1, window_bounds = array<i64: 32, 64>}, {transform_indices = @transform_2, window_bounds = array<i64: 1, 64>}, {transform_indices = @transform_3, window_bounds = array<i64: 1, 64>}, {transform_indices = @transform_4, window_bounds = array<i64: 1, 64>}, {transform_indices = @transform_5, window_bounds = array<i64: 8, 64>}]} {
    %c0 = arith.constant 0 : index
    %c0_0 = arith.constant 0 : index
    %0 = vector.load %arg1[%c0, %c0_0] : memref<8x32xf32, #tpu.memory_space<vmem>>, vector<8x32xf32>
    %c0_1 = arith.constant 0 : index
    %c0_2 = arith.constant 0 : index
    %1 = vector.load %arg2[%c0_1, %c0_2] : memref<32x64xf32, #tpu.memory_space<vmem>>, vector<32x64xf32>
    %cst = arith.constant dense<0.000000e+00> : vector<8x64xf32>
    %2 = tpu.matmul %0, %1, %cst {dimension_numbers = #tpu.dot_dimension_numbers<[1], [0], [0], [1], [0, 0, 1, 1], [], []>} : vector<8x32xf32>, vector<32x64xf32>, vector<8x64xf32> -> vector<8x64xf32>
    %c0_3 = arith.constant 0 : index
    %c0_4 = arith.constant 0 : index
    %3 = vector.load %arg3[%c0_3, %c0_4] : memref<1x64xf32, #tpu.memory_space<vmem>>, vector<1x64xf32>
    %4 = vector.broadcast %3 : vector<1x64xf32> to vector<8x64xf32>
    %5 = arith.addf %2, %4 : vector<8x64xf32>
    %cst_5 = arith.constant dense<0.000000e+00> : vector<64xf32>
    %6 = vector.multi_reduction <add>, %5, %cst_5 [0] : vector<8x64xf32> to vector<64xf32>
    %7 = vector.shape_cast %6 : vector<64xf32> to vector<1x64xf32>
    %cst_6 = arith.constant 8.000000e+00 : f32
    %8 = vector.broadcast %cst_6 : f32 to vector<1x64xf32>
    %9 = arith.divf %7, %8 : vector<1x64xf32>
    %10 = vector.broadcast %9 : vector<1x64xf32> to vector<8x64xf32>
    %11 = arith.subf %5, %10 : vector<8x64xf32>
    %12 = arith.mulf %11, %11 : vector<8x64xf32>
    %cst_7 = arith.constant dense<0.000000e+00> : vector<64xf32>
    %13 = vector.multi_reduction <add>, %12, %cst_7 [0] : vector<8x64xf32> to vector<64xf32>
    %14 = vector.shape_cast %13 : vector<64xf32> to vector<1x64xf32>
    %cst_8 = arith.constant 8.000000e+00 : f32
    %15 = vector.broadcast %cst_8 : f32 to vector<1x64xf32>
    %16 = arith.divf %14, %15 : vector<1x64xf32>
    %cst_9 = arith.constant 9.99999974E-6 : f32
    %17 = vector.broadcast %cst_9 : f32 to vector<1x64xf32>
    %18 = arith.addf %16, %17 : vector<1x64xf32>
    %19 = math.rsqrt %18 : vector<1x64xf32>
    %20 = vector.broadcast %9 : vector<1x64xf32> to vector<8x64xf32>
    %21 = arith.subf %5, %20 : vector<8x64xf32>
    %22 = vector.broadcast %19 : vector<1x64xf32> to vector<8x64xf32>
    %23 = arith.mulf %21, %22 : vector<8x64xf32>
    %c0_10 = arith.constant 0 : index
    %c0_11 = arith.constant 0 : index
    %24 = vector.load %arg4[%c0_10, %c0_11] : memref<1x64xf32, #tpu.memory_space<vmem>>, vector<1x64xf32>
    %25 = vector.broadcast %24 : vector<1x64xf32> to vector<8x64xf32>
    %26 = arith.mulf %23, %25 : vector<8x64xf32>
    %c0_12 = arith.constant 0 : index
    %c0_13 = arith.constant 0 : index
    %27 = vector.load %arg5[%c0_12, %c0_13] : memref<1x64xf32, #tpu.memory_space<vmem>>, vector<1x64xf32>
    %28 = vector.broadcast %27 : vector<1x64xf32> to vector<8x64xf32>
    %29 = arith.addf %26, %28 : vector<8x64xf32>
    %cst_14 = arith.constant 0.000000e+00 : f32
    %30 = vector.broadcast %cst_14 : f32 to vector<8x64xf32>
    %31 = arith.maximumf %29, %30 : vector<8x64xf32>
    %c0_15 = arith.constant 0 : index
    %c0_16 = arith.constant 0 : index
    %32 = vector.load %arg6[%c0_15, %c0_16] : memref<8x64xf32, #tpu.memory_space<vmem>>, vector<8x64xf32>
    tpu.vector_store %arg6[%c0_15, %c0_16], %31 {strides = array<i32>} : memref<8x64xf32, #tpu.memory_space<vmem>>, vector<8x64xf32>,
    return
  }
  func.func @transform_0(%arg0: i32) -> (i32, i32) {
    %c0_i32 = arith.constant 0 : i32
    %c0_i32_0 = arith.constant 0 : i32
    %c0_i32_1 = arith.constant 0 : i32
    return %c0_i32, %c0_i32_0 : i32, i32
  }
  func.func @transform_1(%arg0: i32) -> (i32, i32) {
    %c0_i32 = arith.constant 0 : i32
    %c0_i32_0 = arith.constant 0 : i32
    return %c0_i32, %arg0 : i32, i32
  }
  func.func @transform_2(%arg0: i32) -> (i32, i32) {
    %c0_i32 = arith.constant 0 : i32
    %c0_i32_0 = arith.constant 0 : i32
    return %c0_i32, %arg0 : i32, i32
  }
  func.func @transform_3(%arg0: i32) -> (i32, i32) {
    %c0_i32 = arith.constant 0 : i32
    %c0_i32_0 = arith.constant 0 : i32
    return %c0_i32, %arg0 : i32, i32
  }
  func.func @transform_4(%arg0: i32) -> (i32, i32) {
    %c0_i32 = arith.constant 0 : i32
    %c0_i32_0 = arith.constant 0 : i32
    return %c0_i32, %arg0 : i32, i32
  }
  func.func @transform_5(%arg0: i32) -> (i32, i32) {
    %c0_i32 = arith.constant 0 : i32
    %c0_i32_0 = arith.constant 0 : i32
    return %c0_i32, %arg0 : i32, i32
  }
}

</mosaic_0001>

<llo_original>
// kernel: tpu_custom_call.1
$region0: #{tpu_custom_call.1}
  #allocation0 [shape = 'u32[]', space=smem, size = 0x4, offset = 0x4, fixed_abs, tag = 'smem constant byte address 0x4 - core index']
  #allocation1 [shape = 'u32[144,128]{1,0:T(1,128)}', space=vmem, size = 0x12000, scoped, tag = 'internal scratch']
  %s0 = inlined_call_operand.hbm [shape: f32[8,32], index: 0, kind: input, shape index: {}]
  %s1 = inlined_call_operand.hbm [shape: f32[32,64], index: 1, kind: input, shape index: {}]
  %s2 = inlined_call_operand.vmem [shape: f32[1,64], index: 2, kind: input, shape index: {}]
  %s3 = inlined_call_operand.vmem [shape: f32[1,64], index: 3, kind: input, shape index: {}]
  %s4 = inlined_call_operand.vmem [shape: f32[1,64], index: 4, kind: input, shape index: {}]
  %s5 = inlined_call_operand.hbm [shape: f32[8,64], index: 5, kind: output, shape index: {}]
  %s6 = sld [smem:[#allocation0]]
  $region38: #{tpu_custom_call.1} parent=0
    _
  %s8 = ssub.s32 1, %s6
  %s9 = scalar_select 0, %s8, %s6
  $region1: #{tpu_custom_call.1} parent=0
    #allocation2 [shape = 'u8[4096]{0}', space=vmem, size = 0x1000, scoped, tag = 'input window, operand 0, single buffered']
    #allocation3 [shape = 's32[1]{0}', space=sflag, size = 0x4, scoped, tag = 'scoped memory for tpu_custom_call.1']
    #allocation4 [shape = 's32[1]{0}', space=sflag, size = 0x4, scoped, tag = 'scoped memory for tpu_custom_call.1']
    #allocation5 [shape = 'u8[16384]{0}', space=vmem, size = 0x4000, scoped, tag = 'input window, operand 1, single buffered']
    #allocation6 [shape = 's32[1]{0}', space=sflag, size = 0x4, scoped, tag = 'scoped memory for tpu_custom_call.1']
    #allocation7 [shape = 'u8[4096]{0}', space=vmem, size = 0x1000, scoped, tag = 'output window, operand 0, single buffered']
    %10 = vsyncpa [#allocation3], 0
    %11 = vsyncpa [#allocation6], 0
    %12 = vsyncpa [#allocation4], 0
    // Predicated region
    $region2: #{tpu_custom_call.1} parent=1 // pred_check
      _
    $region3: #{tpu_custom_call.1} parent=1 // pred_check_branch
      %14 = sbr.rel (0) target = $region5
    $region4: #{tpu_custom_call.1} parent=1 // pred_region
      %s16 = ssub.s32 128, 128
      %17 = vsyncadd [#allocation3], %s16
      %s19 = sshll.u32 [#allocation2], 4
      %s20 = int_to_ptr.vmem [resolvable:$true] %s19
      %22 = dma.hbm_to_vmem [thread:$0]  %s0, 128, %s20, [#allocation3]
    $region5: #{tpu_custom_call.1} parent=1 // pred_fallthru
      _
    // Predicated region
    $region6: #{tpu_custom_call.1} parent=1 // pred_check
      _
    $region7: #{tpu_custom_call.1} parent=1 // pred_check_branch
      %24 = sbr.rel (0) target = $region9
    $region8: #{tpu_custom_call.1} parent=1 // pred_region
      %s26 = ssub.s32 512, 512
      %27 = vsyncadd [#allocation6], %s26
      %s28 = sshll.u32 [#allocation5], 4
      %s29 = int_to_ptr.vmem [resolvable:$true] %s28
      %34 = dma.hbm_to_vmem [thread:$0]  %s1, 512, %s29, [#allocation6], 128, 128, 8
    $region9: #{tpu_custom_call.1} parent=1 // pred_fallthru
      _
    // Predicated region
    $region10: #{tpu_custom_call.1} parent=1 // pred_check
      _
    $region11: #{tpu_custom_call.1} parent=1 // pred_check_branch
      %36 = sbr.rel (0) target = $region13
    $region12: #{tpu_custom_call.1} parent=1 // pred_region
      _
    $region13: #{tpu_custom_call.1} parent=1 // pred_fallthru
      _
    // Predicated region
    $region14: #{tpu_custom_call.1} parent=1 // pred_check
      _
    $region15: #{tpu_custom_call.1} parent=1 // pred_check_branch
      %38 = sbr.rel (0) target = $region17
    $region16: #{tpu_custom_call.1} parent=1 // pred_region
      _
    $region17: #{tpu_custom_call.1} parent=1 // pred_fallthru
      _
    // Predicated region
    $region18: #{tpu_custom_call.1} parent=1 // pred_check
      _
    $region19: #{tpu_custom_call.1} parent=1 // pred_check_branch
      %40 = sbr.rel (0) target = $region21
    $region20: #{tpu_custom_call.1} parent=1 // pred_region
      _
    $region21: #{tpu_custom_call.1} parent=1 // pred_fallthru
      _
    // Predicated region
    $region22: #{tpu_custom_call.1} parent=1 // pred_check
      _
    $region23: #{tpu_custom_call.1} parent=1 // pred_check_branch
      %42 = sbr.rel (0) target = $region25
    $region24: #{tpu_custom_call.1} parent=1 // pred_region
      %43 = dma.done [#allocation3], 128
    $region25: #{tpu_custom_call.1} parent=1 // pred_fallthru
      _
    // Predicated region
    $region26: #{tpu_custom_call.1} parent=1 // pred_check
      _
    $region27: #{tpu_custom_call.1} parent=1 // pred_check_branch
      %45 = sbr.rel (0) target = $region29
    $region28: #{tpu_custom_call.1} parent=1 // pred_region
      %46 = dma.done [#allocation6], 512
    $region29: #{tpu_custom_call.1} parent=1 // pred_fallthru
      _
    %v47 = vld [vmem:[#allocation2] sm:$0xff]
    %v48 = vld [vmem:[#allocation5] sm:$0xff]
    %v49 = vld [vmem:[#allocation5 + $0x8] sm:$0xff]
    %v50 = vld [vmem:[#allocation5 + $0x10] sm:$0xff]
    %v51 = vld [vmem:[#allocation5 + $0x18] sm:$0xff]
    %v52 = vld [vmem:[%s2] sm:$0x1]
    %v54 = vlaneseq
    %v55 = vshrl.u32 %v54, 7
    %v56 = vsub.s32 0, %v55
    %v57 = vrot.slane %v52, %v56
    %vm59 = vcmask 261120
    %v61 = vsel %vm59, %v47, 0
    %63 = vmatprep.subr.mxu0 0.0
    %64 = vmatpush1.msra.mxu0 %v48
    %65 = vmatprep.subr.mxu0 0.0
    %66 = vmatpush1.msra.mxu0 %v49
    %67 = vmatprep.subr.mxu0 0.0
    %68 = vmatpush1.msra.mxu0 %v50
    %69 = vmatprep.subr.mxu0 0.0
    %70 = vmatpush1.msra.mxu0 %v51
    %71 = vmatprep.subr.mxu0 0.0
    %72 = vmatpush1.msra.mxu0 0.0
    %73 = vmatprep.subr.mxu0 0.0
    %74 = vmatpush1.msra.mxu0 0.0
    %75 = vmatprep.subr.mxu0 0.0
    %76 = vmatpush1.msra.mxu0 0.0
    %77 = vmatprep.subr.mxu0 0.0
    %78 = vmatpush1.msra.mxu0 0.0
    %79 = vmatprep.subr.mxu0 0.0
    %80 = vmatpush1.msra.mxu0 0.0
    %81 = vmatprep.subr.mxu0 0.0
    %82 = vmatpush1.msra.mxu0 0.0
    %83 = vmatprep.subr.mxu0 0.0
    %84 = vmatpush1.msra.mxu0 0.0
    %85 = vmatprep.subr.mxu0 0.0
    %86 = vmatpush1.msra.mxu0 0.0
    %87 = vmatprep.subr.mxu0 0.0
    %88 = vmatpush1.msra.mxu0 0.0
    %89 = vmatprep.subr.mxu0 0.0
    %90 = vmatpush1.msra.mxu0 0.0
    %91 = vmatprep.subr.mxu0 0.0
    %92 = vmatpush1.msra.mxu0 0.0
    %93 = vmatprep.subr.mxu0 0.0
    %94 = vmatpush1.msra.mxu0 0.0
    %95 = vmatprep.subr.mxu0 0.0
    %96 = vmatpush1.msra.mxu0 0.0
    %97 = vmatprep.subr.mxu0 0.0
    %98 = vmatpush1.msra.mxu0 0.0
    %99 = vmatprep.subr.mxu0 0.0
    %100 = vmatpush1.msra.mxu0 0.0
    %101 = vmatprep.subr.mxu0 0.0
    %102 = vmatpush1.msra.mxu0 0.0
    %103 = vmatprep.subr.mxu0 0.0
    %104 = vmatpush1.msra.mxu0 0.0
    %105 = vmatprep.subr.mxu0 0.0
    %106 = vmatpush1.msra.mxu0 0.0
    %107 = vmatprep.subr.mxu0 0.0
    %108 = vmatpush1.msra.mxu0 0.0
    %109 = vmatprep.subr.mxu0 0.0
    %110 = vmatpush1.msra.mxu0 0.0
    %111 = vmatprep.subr.mxu0 0.0
    %112 = vmatpush1.msra.mxu0 0.0
    %113 = vmatprep.subr.mxu0 0.0
    %114 = vmatpush1.msra.mxu0 0.0
    %115 = vmatprep.subr.mxu0 0.0
    %116 = vmatpush1.msra.mxu0 0.0
    %117 = vmatprep.subr.mxu0 0.0
    %118 = vmatpush1.msra.mxu0 0.0
    %119 = vmatprep.subr.mxu0 0.0
    %120 = vmatpush1.msra.mxu0 0.0
    %121 = vmatprep.subr.mxu0 0.0
    %122 = vmatpush1.msra.mxu0 0.0
    %123 = vmatprep.subr.mxu0 0.0
    %124 = vmatpush1.msra.mxu0 0.0
    %125 = vmatprep.subr.mxu0 0.0
    %126 = vmatpush1.msra.mxu0 0.0
    %127 = vmatprep.mubr.f32.mxu0 0.0
    %128 = vmatmul.mubr.f32.gmra.mrb[0].mxu0 %v61
    %v129 = vpop.f32.mrb[0].mxu0
    %v130 = vadd.f32 %v57, %v129
    %v131 = vpop.f32.mrb[0].mxu0
    %132 = vdwg.mxu0
    %vm133 = vcmask 523264
    %v134 = vsel %vm133, %v130, 0.0
    %v135 = vrot.slane %v134, 4
    %v136 = vadd.f32 %v134, %v135
    %v137 = vrot.slane %v136, 2
    %v138 = vadd.f32 %v136, %v137
    %v139 = vrot.slane %v138, 1
    %v140 = vadd.f32 %v138, %v139
    %v141 = vrcp.pop 8.0
    %v142 = vmul.f32 %v140, %v141
    %v143 = vsub.f32 %v130, %v142
    %v144 = vmul.f32 %v143, %v143
    %v145 = vsel %vm133, %v144, 0.0
    %v146 = vrot.slane %v145, 4
    %v147 = vadd.f32 %v145, %v146
    %v148 = vrot.slane %v147, 2
    %v149 = vadd.f32 %v147, %v148
    %v150 = vrot.slane %v149, 1
    %v151 = vadd.f32 %v149, %v150
    %v152 = vmul.f32 %v151, %v141
    %v153 = vadd.f32 %v152, 1e-05
    %v154 = vrsqrt.pop %v153
    %v155 = vmul.f32 %v143, %v154
    %v156 = vld [vmem:[%s3] sm:$0x1]
    %v158 = vlaneseq
    %v159 = vshrl.u32 %v158, 7
    %v160 = vsub.s32 0, %v159
    %v161 = vrot.slane %v156, %v160
    %v163 = vmul.f32 %v155, %v161
    %v164 = vld [vmem:[%s4] sm:$0x1]
    %v166 = vlaneseq
    %v167 = vshrl.u32 %v166, 7
    %v168 = vsub.s32 0, %v167
    %v169 = vrot.slane %v164, %v168
    %v171 = vadd.f32 %v163, %v169
    %v172 = vmax.f32 %v171, 0.0
    %173 = vst.msk [vmem:[#allocation7] sm:$0xff] %vm133, %v172
    // Predicated region
    $region30: #{tpu_custom_call.1} parent=1 // pred_check
      _
    $region31: #{tpu_custom_call.1} parent=1 // pred_check_branch
      %175 = sbr.rel (0) target = $region33
    $region32: #{tpu_custom_call.1} parent=1 // pred_region
      %s177 = ssub.s32 128, 128
      %178 = vsyncadd [#allocation4], %s177
      %s180 = sshll.u32 [#allocation7], 4
      %s181 = int_to_ptr.vmem [resolvable:$true] %s180
      %183 = dma.vmem_to_hbm [thread:$0]  %s181, 128, %s5, [#allocation4]
    $region33: #{tpu_custom_call.1} parent=1 // pred_fallthru
      _
    // Predicated region
    $region34: #{tpu_custom_call.1} parent=1 // pred_check
      _
    $region35: #{tpu_custom_call.1} parent=1 // pred_check_branch
      %185 = sbr.rel (0) target = $region37
    $region36: #{tpu_custom_call.1} parent=1 // pred_region
      %186 = dma.done [#allocation4], 128
    $region37: #{tpu_custom_call.1} parent=1 // pred_fallthru
      _
    %187 = vsyncpa [#allocation3], 1
    %188 = vsyncpa [#allocation6], 1
    %189 = vsyncpa [#allocation4], 1

</llo_original>
